<compile_context>
chip_gen: v6e
topology: v6e:2x2x1
jax: 0.10.0
libtpu: 0.0.40
codegen_flags: <defaults>
</compile_context>

<pallas_src>
import jax
import jax.numpy as jnp
from jax.experimental import pallas as pl
from jax.experimental.pallas import tpu as pltpu

LANE = 128
HALO_BLK = 128   # halo fetched as one 128-wide lane block


def _round_up(x, m):
    return ((x + m - 1) // m) * m


def _vmem_capacity_bytes():
    try:
        return int(pltpu.get_tpu_info().vmem_capacity_bytes)
    except Exception:
        return 64 * 1024 * 1024   # conservative: true on v7x, lower bound elsewhere


def _make_kernel(*, use_mxu, has_halo, c_in_p, c_out_p, stride, q_taps, l_tile,
                 compute_dtype):
    """Kernel over one (batch, length-tile) grid point."""
    bulk_w = l_tile - HALO_BLK if has_halo else l_tile

    def kernel(x_ref, *rest):
        # x_ref : (1, stride*c_in_p, l_tile)  main window (stride phases folded
        #         into the channel axis -> always an effective stride-1 conv)
        # xh_ref: (1, stride*c_in_p, 128)     first 128 cols of the next tile
        # VPU path weights: dw_ref (q_taps, C, 1), pw_ref (c_out_p, c_in_p)
        # MXU path weights: w3_ref (q_taps, c_out_p, C)   (pw folded into dw)
        # b_ref : (c_out_p, 1) f32 fused bias; o_ref: (1, c_out_p, l_tile)
        rest = list(rest)
        xh_ref = rest.pop(0) if has_halo else None
        if use_mxu:
            w3_ref, b_ref, o_ref = rest
        else:
            dw_ref, pw_ref, b_ref, o_ref = rest

        xm = x_ref[0].astype(compute_dtype)   # no-op when dtypes already match
        b = b_ref[...].astype(jnp.float32)

        if use_mxu:
            def fused(window):
                # whole layer = q_taps accumulated MXU matmuls, f32 accumulate
                acc = jnp.dot(w3_ref[0], window(0),
                              preferred_element_type=jnp.float32)
                for q in range(1, q_taps):
                    acc = acc + jnp.dot(w3_ref[q], window(q),
                                        preferred_element_type=jnp.float32)
                return acc + b
        else:
            pw = pw_ref[...]

            def fused(window):
                # depthwise on the VPU: operands in compute dtype, f32 acc only
                acc = (window(0) * dw_ref[0]).astype(jnp.float32)
                for q in range(1, q_taps):
                    acc = acc + (window(q) * dw_ref[q]).astype(jnp.float32)
                # fold stride phases back onto the original channel axis
                dw_out = acc[0:c_in_p]
                for r in range(1, stride):
                    dw_out = dw_out + acc[r * c_in_p:(r + 1) * c_in_p]
                # pointwise 1x1 conv == one MXU matmul, f32 accumulate
                y = jnp.dot(pw, dw_out.astype(pw.dtype),
                            preferred_element_type=jnp.float32)
                return y + b

        # ---- bulk: output columns [0, bulk_w) need only the main tile --------
        if bulk_w > 0:
            def bulk_window(q):
                if q == 0:
                    return xm[:, :bulk_w]
                # XLU rotate + lane-aligned slice (no unaligned relayout copy)
                return pltpu.roll(xm, l_tile - q, 1)[:, :bulk_w]

            o_ref[0, :, :bulk_w] = fused(bulk_window).astype(o_ref.dtype)

        # ---- seam: last 128 columns also need the start of the next tile -----
        if has_halo:
            tail = jnp.concatenate(
                [xm[:, l_tile - HALO_BLK:], xh_ref[0].astype(compute_dtype)],
                axis=-1)                               # (C, 256) -- tiny

            def seam_window(q):
                return tail[:, q:q + HALO_BLK]

            o_ref[0, :, bulk_w:] = fused(seam_window).astype(o_ref.dtype)

    return kernel


def depthwise_separable_conv1d(x, dw_w, dw_b, pw_w, pw_b, *, stride=1, padding=0,
                               compute_dtype=None, weight_dtype=None,
                               use_mxu_fold=None, max_l_tile=None):
    """Forward of the PyTorch DepthwiseSeparableConv1d module.

    x: (N, C_in, L); dw_w: (C_in, 1, K); dw_b: (C_in,);
    pw_w: (C_out, C_in, 1); pw_b: (C_out,).  Returns (N, C_out, L_out).

    compute_dtype : depthwise multiply operand dtype (default: bf16 for bf16
        inputs, f32 otherwise; pass f32 on v5e, which has no bf16 VPU).
    weight_dtype  : MXU matmul operand dtype (default: pw_w.dtype; pass
        jnp.bfloat16 on v6e/v7x for the fast MXU path, slight precision loss).
    use_mxu_fold  : fold the depthwise into the pointwise (q_taps accumulated
        MXU matmuls).  Default: auto, when in/out channels are both >= 64.
    max_l_tile    : optional cap on the length tile (mainly for testing).
    """
    n, c_in, length = x.shape
    ksize = dw_w.shape[-1]
    c_out = pw_w.shape[0]
    out_dtype = x.dtype

    l_pad = length + 2 * padding
    l_out = (l_pad - ksize) // stride + 1
    assert l_out >= 1, "empty output"

    c_in_p = _round_up(c_in, 8)
    c_out_p = _round_up(c_out, 8)
    q_taps = -(-ksize // stride)          # ceil(K / stride): taps after phase fold
    halo = q_taps - 1
    assert halo <= HALO_BLK, "kernel_size too large for the 128-wide halo block"
    has_halo = halo > 0
    c_eff_p = stride * c_in_p

    if use_mxu_fold is None:
        use_mxu_fold = (c_in >= 64 and c_out >= 64)
    if compute_dtype is None:
        compute_dtype = jnp.bfloat16 if x.dtype == jnp.bfloat16 else jnp.float32
    w_dtype = pw_w.dtype if weight_dtype is None else weight_dtype
    if use_mxu_fold:
        compute_dtype = w_dtype           # MXU operands share the weight dtype

    # ---- parameter prep (tiny, done once in plain JAX) -----------------------
    # depthwise tap k = q*stride + r acts on folded-channel row r*c_in_p + c
    dwk = jnp.pad(dw_w[:, 0, :].astype(jnp.float32),
                  ((0, c_in_p - c_in), (0, q_taps * stride - ksize)))
    pwp = jnp.pad(pw_w[:, :, 0].astype(jnp.float32),
                  ((0, c_out_p - c_out), (0, c_in_p - c_in)))
    # depthwise bias passes linearly through the 1x1 conv -> one fused bias
    fused_b = (pw_b.astype(jnp.float32)
               + pw_w[:, :, 0].astype(jnp.float32) @ dw_b.astype(jnp.float32))
    fused_b = jnp.pad(fused_b, (0, c_out_p - c_out))[:, None]       # (c_out_p, 1)

    dwk3 = dwk.reshape(c_in_p, q_taps, stride)                      # [c, q, r]
    if use_mxu_fold:
        # W_q[o, r*c_in_p + c] = pw[o, c] * dw[c, q*stride + r]
        w3 = jnp.einsum("oc,cqr->qorc", pwp, dwk3).reshape(q_taps, c_out_p, c_eff_p)
        weight_args = (w3.astype(w_dtype),)
    else:
        dw3 = dwk3.transpose(1, 2, 0).reshape(q_taps, c_eff_p, 1)   # [q, r*c+c, 1]
        weight_args = (dw3.astype(compute_dtype), pwp.astype(w_dtype))

    # ---- input layout: pad, fold stride phases into the channel axis ---------
    x_p = jnp.pad(x, ((0, 0), (0, c_in_p - c_in), (padding, padding)))
    if stride > 1:
        l_pad2 = _round_up(l_pad, stride)
        x_p = jnp.pad(x_p, ((0, 0), (0, 0), (0, l_pad2 - l_pad)))
        l_cols = l_pad2 // stride
        x_p = (x_p.reshape(n, c_in_p, l_cols, stride)
                  .transpose(0, 3, 1, 2)
                  .reshape(n, c_eff_p, l_cols))
    else:
        l_cols = l_pad

    # ---- length tiling: lane-dense tiles, generation-aware VMEM budget -------
    in_item = x.dtype.itemsize
    out_item = jnp.dtype(out_dtype).itemsize
    cmp_item = jnp.dtype(compute_dtype).itemsize
    if use_mxu_fold:
        # cast copy + one rolled window (compute dtype) + f32 acc/result
        tmp_cols = c_eff_p * 2 * cmp_item + c_out_p * 2 * 4
    else:
        # cast copy + rolled window + f32 acc/product + dw_out + y
        tmp_cols = c_eff_p * (2 * cmp_item + 2 * 4) + (c_in_p + c_out_p) * 4
    bytes_per_col = (2 * c_eff_p * in_item          # double-buffered input tile
                     + 2 * c_out_p * out_item       # double-buffered output tile
                     + tmp_cols)                    # in-kernel temporaries

    vmem_cap = _vmem_capacity_bytes()
    budget = max(4 << 20, int(vmem_cap * 0.45))
    l_out_pad = _round_up(l_out, LANE)
    max_tile = max(LANE, (budget // max(bytes_per_col, 1)) // LANE * LANE)
    l_tile = int(min(l_out_pad, max_tile, 8192))
    if max_l_tile is not None:
        l_tile = min(l_tile, max(LANE, (int(max_l_tile) // LANE) * LANE))
    # batch == 1: split the length axis so both v7x TensorCores get work
    if n == 1 and l_out_pad >= 2 * LANE:
        l_tile = min(l_tile, _round_up(l_out_pad // 2, LANE))
    n_tiles = -(-l_out // l_tile)

    total_cols = n_tiles * l_tile + (HALO_BLK if has_halo else 0)
    x_p = jnp.pad(x_p, ((0, 0), (0, 0), (0, max(0, total_cols - l_cols))))
    x_p = x_p[:, :, :total_cols]

    kernel = _make_kernel(use_mxu=use_mxu_fold, has_halo=has_halo,
                          c_in_p=c_in_p, c_out_p=c_out_p, stride=stride,
                          q_taps=q_taps, l_tile=l_tile,
                          compute_dtype=compute_dtype)

    halo_blocks_per_tile = l_tile // HALO_BLK
    in_specs = [pl.BlockSpec((1, c_eff_p, l_tile), lambda b, t: (b, 0, t))]
    inputs = [x_p]
    if has_halo:
        in_specs.append(
            pl.BlockSpec((1, c_eff_p, HALO_BLK),
                         lambda b, t: (b, 0, (t + 1) * halo_blocks_per_tile)))
        inputs.append(x_p)
    # weights/bias: constant index_maps -> the pipeline keeps them VMEM-resident
    for w in weight_args + (fused_b,):
        in_specs.append(pl.BlockSpec(tuple(w.shape),
                                     lambda b, t, nd=w.ndim: (0,) * nd))
        inputs.append(w)

    if use_mxu_fold:
        flops = 2 * n * l_out * c_out_p * c_eff_p * q_taps
    else:
        flops = 2 * n * l_out * (c_in * ksize + c_out * c_in)
    bytes_accessed = int(x.size * x.dtype.itemsize
                         + sum(int(w.size) * w.dtype.itemsize for w in weight_args)
                         + n * c_out * l_out * out_item)

    out = pl.pallas_call(
        kernel,
        out_shape=jax.ShapeDtypeStruct((n, c_out_p, n_tiles * l_tile), out_dtype),
        grid_spec=pltpu.PrefetchScalarGridSpec(
            num_scalar_prefetch=0,
            grid=(n, n_tiles),
            in_specs=in_specs,
            out_specs=pl.BlockSpec((1, c_out_p, l_tile), lambda b, t: (b, 0, t)),
        ),
        compiler_params=pltpu.CompilerParams(
            dimension_semantics=("parallel", "parallel"),
            vmem_limit_bytes=min(int(vmem_cap * 0.8), 110 * 1024 * 1024),
        ),
        cost_estimate=pl.CostEstimate(
            flops=int(flops), transcendentals=0, bytes_accessed=bytes_accessed),
    )(*inputs)

    return out[:, :c_out, :l_out]


def _reference(x, dw_w, dw_b, pw_w, pw_b, *, stride=1, padding=0):
    """Plain-JAX reference of the PyTorch forward (for correctness checks)."""
    xp = jnp.pad(x, ((0, 0), (0, 0), (padding, padding)))
    ksize = dw_w.shape[-1]
    l_out = (xp.shape[-1] - ksize) // stride + 1
    cols = jnp.stack(
        [xp[:, :, k:k + (l_out - 1) * stride + 1:stride] for k in range(ksize)],
        axis=-1,
    )                                                            # (N, C, L_out, K)
    dwo = jnp.einsum("nclk,ck->ncl", cols, dw_w[:, 0, :]) + dw_b[None, :, None]
    out = jnp.einsum("oc,ncl->nol", pw_w[:, :, 0], dwo) + pw_b[None, :, None]
    return out


if __name__ == "__main__":
    key = jax.random.PRNGKey(0)

    def make_params(k, c_in, c_out, ksize):
        k1, k2, k3, k4 = jax.random.split(k, 4)
        dw_bd = 1.0 / ksize ** 0.5            # groups=C_in -> fan_in = K
        pw_bd = 1.0 / c_in ** 0.5
        return (jax.random.uniform(k1, (c_in, 1, ksize), jnp.float32, -dw_bd, dw_bd),
                jax.random.uniform(k2, (c_in,), jnp.float32, -dw_bd, dw_bd),
                jax.random.uniform(k3, (c_out, c_in, 1), jnp.float32, -pw_bd, pw_bd),
                jax.random.uniform(k4, (c_out,), jnp.float32, -pw_bd, pw_bd))

    def check(x, params, **kw):
        dw_w, dw_b, pw_w, pw_b = params
        stride, padding = kw["stride"], kw["padding"]
        out = depthwise_separable_conv1d(x, dw_w, dw_b, pw_w, pw_b, **kw)
        out = jax.block_until_ready(out)
        ref = _reference(x, dw_w, dw_b, pw_w, pw_b, stride=stride, padding=padding)
        assert out.shape == ref.shape, (out.shape, ref.shape)
        err = float(jnp.max(jnp.abs(out - ref)))
        assert jnp.allclose(out, ref, atol=2e-4, rtol=2e-4), (kw, err)

    kx1, kx2, kp1, kp2, kp3 = jax.random.split(key, 5)

    # small shapes consistent with the module forward: x is (N, C_in, L)
    x_small = jax.random.normal(kx1, (2, 4, 16), dtype=jnp.float32)
    p_k3 = make_params(kp1, 4, 8, 3)
    check(x_small, p_k3, stride=1, padding=1)                       # VPU path
    check(x_small, p_k3, stride=2, padding=1)                       # stride phase fold
    check(x_small, p_k3, stride=1, padding=1, use_mxu_fold=True)    # MXU-fold path
    check(x_small, p_k3, stride=2, padding=1, use_mxu_fold=True)

    # kernel_size == 1: no halo input / halo DMA at all
    p_k1 = make_params(kp2, 4, 8, 1)
    check(x_small, p_k1, stride=1, padding=0)

    # multiple length tiles: exercises the rolled bulk path + real cross-tile halo
    x_long = jax.random.normal(kx2, (1, 4, 600), dtype=jnp.float32)
    p_k5 = make_params(kp3, 4, 8, 5)
    check(x_long, p_k5, stride=1, padding=2, max_l_tile=256)
    check(x_long, p_k5, stride=2, padding=2, max_l_tile=256)
    check(x_long, p_k5, stride=1, padding=2, max_l_tile=256, use_mxu_fold=True)

    print("KERNEL_OK")
</pallas_src>

<mosaic_0001>
module attributes {stable_mosaic.version = 11 : i64} {
  func.func @kernel(%arg0: i32, %arg1: i32, %arg2: memref<1x8x128xf32, #tpu.memory_space<vmem>>, %arg3: memref<1x8x128xf32, #tpu.memory_space<vmem>>, %arg4: memref<3x8x1xf32, #tpu.memory_space<vmem>>, %arg5: memref<8x8xf32, #tpu.memory_space<vmem>>, %arg6: memref<8x1xf32, #tpu.memory_space<vmem>>, %arg7: memref<1x8x128xf32, #tpu.memory_space<vmem>>) attributes {dimension_semantics = [#tpu.dimension_semantics<parallel>, #tpu.dimension_semantics<parallel>], iteration_bounds = array<i64: 2, 1>, scalar_prefetch = 0 : i64, scratch_operands = 0 : i64, tpu.core_type = #tpu.core_type<tc>, window_params = [{transform_indices = @transform_0, window_bounds = array<i64: 1, 8, 128>}, {transform_indices = @transform_1, window_bounds = array<i64: 1, 8, 128>}, {pipeline_mode = #tpu.pipeline_mode<synchronous>, transform_indices = @transform_2, window_bounds = array<i64: 3, 8, 1>}, {pipeline_mode = #tpu.pipeline_mode<synchronous>, transform_indices = @transform_3, window_bounds = array<i64: 8, 8>}, {pipeline_mode = #tpu.pipeline_mode<synchronous>, transform_indices = @transform_4, window_bounds = array<i64: 8, 1>}, {transform_indices = @transform_5, window_bounds = array<i64: 1, 8, 128>}]} {
    %c0 = arith.constant 0 : index
    %c0_0 = arith.constant 0 : index
    %c0_1 = arith.constant 0 : index
    %0 = vector.load %arg2[%c0, %c0_0, %c0_1] : memref<1x8x128xf32, #tpu.memory_space<vmem>>, vector<1x8x128xf32>
    %1 = vector.shape_cast %0 : vector<1x8x128xf32> to vector<8x128xf32>
    %c0_2 = arith.constant 0 : index
    %c0_3 = arith.constant 0 : index
    %2 = vector.load %arg6[%c0_2, %c0_3] : memref<8x1xf32, #tpu.memory_space<vmem>>, vector<8x1xf32>
    %c0_4 = arith.constant 0 : index
    %c0_5 = arith.constant 0 : index
    %3 = vector.load %arg5[%c0_4, %c0_5] : memref<8x8xf32, #tpu.memory_space<vmem>>, vector<8x8xf32>
    %c0_6 = arith.constant 0 : index
    %c0_7 = arith.constant 0 : index
    %c0_8 = arith.constant 0 : index
    %4 = vector.load %arg3[%c0_6, %c0_7, %c0_8] : memref<1x8x128xf32, #tpu.memory_space<vmem>>, vector<1x8x128xf32>
    %5 = vector.shape_cast %4 : vector<1x8x128xf32> to vector<8x128xf32>
    %6 = tpu.concatenate %1, %5 in 1 : vector<8x128xf32>, vector<8x128xf32> -> vector<8x256xf32>
    %7 = vector.extract_strided_slice %6 {offsets = [0, 0], sizes = [8, 128], strides = [1, 1]} : vector<8x256xf32> to vector<8x128xf32>
    %c0_9 = arith.constant 0 : index
    %c0_10 = arith.constant 0 : index
    %c0_11 = arith.constant 0 : index
    %8 = vector.load %arg4[%c0_9, %c0_10, %c0_11] : memref<3x8x1xf32, #tpu.memory_space<vmem>>, vector<1x8x1xf32>
    %9 = vector.shape_cast %8 : vector<1x8x1xf32> to vector<8x1xf32>
    %10 = vector.broadcast %9 : vector<8x1xf32> to vector<8x128xf32>
    %11 = arith.mulf %7, %10 : vector<8x128xf32>
    %12 = vector.extract_strided_slice %6 {offsets = [0, 1], sizes = [8, 128], strides = [1, 1]} : vector<8x256xf32> to vector<8x128xf32>
    %c1 = arith.constant 1 : index
    %c0_12 = arith.constant 0 : index
    %c0_13 = arith.constant 0 : index
    %13 = vector.load %arg4[%c1, %c0_12, %c0_13] : memref<3x8x1xf32, #tpu.memory_space<vmem>>, vector<1x8x1xf32>
    %14 = vector.shape_cast %13 : vector<1x8x1xf32> to vector<8x1xf32>
    %15 = vector.broadcast %14 : vector<8x1xf32> to vector<8x128xf32>
    %16 = arith.mulf %12, %15 : vector<8x128xf32>
    %17 = arith.addf %11, %16 : vector<8x128xf32>
    %18 = vector.extract_strided_slice %6 {offsets = [0, 2], sizes = [8, 128], strides = [1, 1]} : vector<8x256xf32> to vector<8x128xf32>
    %c2 = arith.constant 2 : index
    %c0_14 = arith.constant 0 : index
    %c0_15 = arith.constant 0 : index
    %19 = vector.load %arg4[%c2, %c0_14, %c0_15] : memref<3x8x1xf32, #tpu.memory_space<vmem>>, vector<1x8x1xf32>
    %20 = vector.shape_cast %19 : vector<1x8x1xf32> to vector<8x1xf32>
    %21 = vector.broadcast %20 : vector<8x1xf32> to vector<8x128xf32>
    %22 = arith.mulf %18, %21 : vector<8x128xf32>
    %23 = arith.addf %17, %22 : vector<8x128xf32>
    %cst = arith.constant dense<0.000000e+00> : vector<8x128xf32>
    %24 = tpu.matmul %3, %23, %cst {dimension_numbers = #tpu.dot_dimension_numbers<[1], [0], [0], [1], [0, 0, 1, 1], [], []>} : vector<8x8xf32>, vector<8x128xf32>, vector<8x128xf32> -> vector<8x128xf32>
    %25 = vector.broadcast %2 : vector<8x1xf32> to vector<8x128xf32>
    %26 = arith.addf %24, %25 : vector<8x128xf32>
    %c0_16 = arith.constant 0 : index
    %c0_17 = arith.constant 0 : index
    %c0_18 = arith.constant 0 : index
    %27 = vector.load %arg7[%c0_16, %c0_17, %c0_18] : memref<1x8x128xf32, #tpu.memory_space<vmem>>, vector<1x8x128xf32>
    %28 = vector.shape_cast %27 : vector<1x8x128xf32> to vector<8x128xf32>
    %29 = vector.shape_cast %26 : vector<8x128xf32> to vector<1x8x128xf32>
    tpu.vector_store %arg7[%c0_16, %c0_17, %c0_18], %29 {strides = array<i32>} : memref<1x8x128xf32, #tpu.memory_space<vmem>>, vector<1x8x128xf32>,
    return
  }
  func.func @transform_0(%arg0: i32, %arg1: i32) -> (i32, i32, i32) {
    %c0_i32 = arith.constant 0 : i32
    %c0_i32_0 = arith.constant 0 : i32
    return %arg0, %c0_i32, %arg1 : i32, i32, i32
  }
  func.func @transform_1(%arg0: i32, %arg1: i32) -> (i32, i32, i32) {
    %c1_i32 = arith.constant 1 : i32
    %0 = arith.addi %arg1, %c1_i32 : i32
    %c1_i32_0 = arith.constant 1 : i32
    %1 = arith.muli %0, %c1_i32_0 : i32
    %c0_i32 = arith.constant 0 : i32
    %c0_i32_1 = arith.constant 0 : i32
    return %arg0, %c0_i32, %1 : i32, i32, i32
  }
  func.func @transform_2(%arg0: i32, %arg1: i32) -> (i32, i32, i32) {
    %c0_i32 = arith.constant 0 : i32
    %c0_i32_0 = arith.constant 0 : i32
    %c0_i32_1 = arith.constant 0 : i32
    %c0_i32_2 = arith.constant 0 : i32
    return %c0_i32, %c0_i32_0, %c0_i32_1 : i32, i32, i32
  }
  func.func @transform_3(%arg0: i32, %arg1: i32) -> (i32, i32) {
    %c0_i32 = arith.constant 0 : i32
    %c0_i32_0 = arith.constant 0 : i32
    %c0_i32_1 = arith.constant 0 : i32
    return %c0_i32, %c0_i32_0 : i32, i32
  }
  func.func @transform_4(%arg0: i32, %arg1: i32) -> (i32, i32) {
    %c0_i32 = arith.constant 0 : i32
    %c0_i32_0 = arith.constant 0 : i32
    %c0_i32_1 = arith.constant 0 : i32
    return %c0_i32, %c0_i32_0 : i32, i32
  }
  func.func @transform_5(%arg0: i32, %arg1: i32) -> (i32, i32, i32) {
    %c0_i32 = arith.constant 0 : i32
    %c0_i32_0 = arith.constant 0 : i32
    return %arg0, %c0_i32, %arg1 : i32, i32, i32
  }
}

</mosaic_0001>

<llo_original>
// kernel: tpu_custom_call.1
$region0: #{tpu_custom_call.1}
  #allocation0 [shape = 'u32[]', space=smem, size = 0x4, offset = 0x4, fixed_abs, tag = 'smem constant byte address 0x4 - core index']
  #allocation1 [shape = 'u32[144,128]{1,0:T(1,128)}', space=vmem, size = 0x12000, scoped, tag = 'internal scratch']
  %s0 = inlined_call_operand.vmem [shape: f32[2,8,256], index: 0, kind: input, shape index: {}]
  %s1 = inlined_call_operand.hbm [shape: f32[2,8,256], index: 1, kind: input, shape index: {}]
  %s2 = inlined_call_operand.vmem [shape: f32[3,8,1], index: 2, kind: input, shape index: {}]
  %s3 = inlined_call_operand.vmem [shape: f32[8,8], index: 3, kind: input, shape index: {}]
  %s4 = inlined_call_operand.vmem [shape: f32[8,1], index: 4, kind: input, shape index: {}]
  %s5 = inlined_call_operand.hbm [shape: f32[2,8,128], index: 5, kind: output, shape index: {}]
  %s6 = sld [smem:[#allocation0]]
  $region57: #{tpu_custom_call.1} parent=0
    _
  %s8 = ssub.s32 1, %s6
  %s9 = scalar_select 0, %s8, %s6
  $region1: #{tpu_custom_call.1} parent=0
    #allocation2 [shape = 'u8[8192]{0}', space=vmem, size = 0x2000, scoped, tag = 'input window, operand 1']
    #allocation3 [shape = 's32[2]{0}', space=sflag, size = 0x8, scoped, tag = 'scoped memory for tpu_custom_call.1']
    #allocation4 [shape = 's32[2]{0}', space=sflag, size = 0x8, scoped, tag = 'scoped memory for tpu_custom_call.1']
    #allocation5 [shape = 'u8[8192]{0}', space=vmem, size = 0x2000, scoped, tag = 'output window, operand 0']
    %10 = vsyncpa [#allocation3], 0
    %s11 = scalar_lea.sflag [#allocation3], 1
    %12 = vsyncpa %s11, 0
    %13 = vsyncpa [#allocation4], 0
    %s14 = scalar_lea.sflag [#allocation4], 1
    %15 = vsyncpa %s14, 0
    loop: start=0, step=1, limit=4
    $region2: #{tpu_custom_call.1} parent=1 // loop_pre_header
      _
    $region3: #{tpu_custom_call.1} parent=1 // loop_header
      %s17 = sphi 0, %s21
      %p18 = scmp.ge.s32.totalorder %s17, 4
      %s24 = sphi 0, %s36
      %s25 = sphi 0, %s32
      %s26 = sphi 0, %s24
      %s27 = sphi 0, %s25
      %s28 = sphi 0, %s26
      %s29 = sphi 0, %s27
      %s41 = sphi 0, %s43
      %s44 = sphi 0, %s41
      %s45 = sphi 0, %s44
      %s61 = sphi 0, %s45
      %s71 = sphi 0, %s73
      %s74 = sphi 0, %s71
      %s75 = sphi 0, %s74
      %s91 = sphi 0, %s75
      %s95 = sphi 0, %s95
      %s97 = sphi 0, %s95
      %s98 = sphi 0, %s97
      %s112 = sphi 0, %s98
      %s116 = sphi 0, %s116
      %s118 = sphi 0, %s116
      %s119 = sphi 0, %s118
      %s133 = sphi 0, %s119
      %s137 = sphi 0, %s137
      %s139 = sphi 0, %s137
      %s140 = sphi 0, %s139
      %s154 = sphi 0, %s140
      %s162 = sphi 0, %s164
      %s165 = sphi 0, %s162
      %s166 = sphi 0, %s165
      %s182 = sphi 0, %s166
    $region4: #{tpu_custom_call.1} parent=1 // loop_header_branch
      %20 = sbr.rel (%p18) target = $region8
    $region5: #{tpu_custom_call.1} parent=1 // loop_body
      %s22 = ssub.s32 %s17, 1
      %s23 = ssub.s32 %s17, 2
      %s30 = sadd.s32 1, %s25
      %p31 = scmp.ge.s32.totalorder %s30, 1
      %s32 = scalar_select %p31, 0, %s30
      %s33 = sadd.s32 1, %s24
      %s34 = scalar_select %p31, %s33, %s24
      %p35 = scmp.ge.s32.totalorder %s34, 2
      %s36 = scalar_select %p35, 0, %s34
      %s37 = ssub.s32 %s24, %s36
      %s38 = ssub.s32 %s25, %s32
      %s39 = sor.u32 %s37, %s38
      %p40 = scmp.eq.s32.totalorder %s39, 0
      %s42 = sadd.s32 %s41, 1
      %s43 = scalar_select %p40, %s41, %s42
      %p46 = pneg %p40
      %p47 = scmp.eq.s32.totalorder %s17, 1
      %p48 = por %p46, %p47
      %p49 = scmp.ne.s32.totalorder %s41, %s44
      %p50 = scmp.eq.s32.totalorder %s17, 0
      %p51 = por %p49, %p50
      %p52 = scmp.ne.s32.totalorder %s41, %s44
      %p53 = scmp.eq.s32.totalorder %s22, 1
      %p54 = por %p52, %p53
      %p55 = scmp.ne.s32.totalorder %s44, %s45
      %p56 = scmp.eq.s32.totalorder %s22, 0
      %p57 = por %p55, %p56
      %p58 = scmp.ne.s32.totalorder %s44, %s45
      %p59 = scmp.eq.s32.totalorder %s23, 1
      %p60 = por %p58, %p59
      %p62 = scmp.ne.s32.totalorder %s45, %s61
      %p63 = scmp.eq.s32.totalorder %s23, 0
      %p64 = por %p62, %p63
      %s65 = sadd.s32 %s25, 1
      %s66 = sadd.s32 %s32, 1
      %s67 = ssub.s32 %s24, %s36
      %s68 = ssub.s32 %s65, %s66
      %s69 = sor.u32 %s67, %s68
      %p70 = scmp.eq.s32.totalorder %s69, 0
      %s72 = sadd.s32 %s71, 1
      %s73 = scalar_select %p70, %s71, %s72
      %p76 = pneg %p70
      %p77 = scmp.eq.s32.totalorder %s17, 1
      %p78 = por %p76, %p77
      %p79 = scmp.ne.s32.totalorder %s71, %s74
      %p80 = scmp.eq.s32.totalorder %s17, 0
      %p81 = por %p79, %p80
      %p82 = scmp.ne.s32.totalorder %s71, %s74
      %p83 = scmp.eq.s32.totalorder %s22, 1
      %p84 = por %p82, %p83
      %p85 = scmp.ne.s32.totalorder %s74, %s75
      %p86 = scmp.eq.s32.totalorder %s22, 0
      %p87 = por %p85, %p86
      %p88 = scmp.ne.s32.totalorder %s74, %s75
      %p89 = scmp.eq.s32.totalorder %s23, 1
      %p90 = por %p88, %p89
      %p92 = scmp.ne.s32.totalorder %s75, %s91
      %p93 = scmp.eq.s32.totalorder %s23, 0
      %p94 = por %p92, %p93
      %s96 = sadd.s32 %s95, 1
      %p99 = scmp.eq.s32.totalorder %s17, 1
      %p100 = scmp.ne.s32.totalorder %s95, %s97
      %p101 = scmp.eq.s32.totalorder %s17, 0
      %p102 = por %p100, %p101
      %p103 = scmp.ne.s32.totalorder %s95, %s97
      %p104 = scmp.eq.s32.totalorder %s22, 1
      %p105 = por %p103, %p104
      %p106 = scmp.ne.s32.totalorder %s97, %s98
      %p107 = scmp.eq.s32.totalorder %s22, 0
      %p108 = por %p106, %p107
      %p109 = scmp.ne.s32.totalorder %s97, %s98
      %p110 = scmp.eq.s32.totalorder %s23, 1
      %p111 = por %p109, %p110
      %p113 = scmp.ne.s32.totalorder %s98, %s112
      %p114 = scmp.eq.s32.totalorder %s23, 0
      %p115 = por %p113, %p114
      %s117 = sadd.s32 %s116, 1
      %p120 = scmp.eq.s32.totalorder %s17, 1
      %p121 = scmp.ne.s32.totalorder %s116, %s118
      %p122 = scmp.eq.s32.totalorder %s17, 0
      %p123 = por %p121, %p122
      %p124 = scmp.ne.s32.totalorder %s116, %s118
      %p125 = scmp.eq.s32.totalorder %s22, 1
      %p126 = por %p124, %p125
      %p127 = scmp.ne.s32.totalorder %s118, %s119
      %p128 = scmp.eq.s32.totalorder %s22, 0
      %p129 = por %p127, %p128
      %p130 = scmp.ne.s32.totalorder %s118, %s119
      %p131 = scmp.eq.s32.totalorder %s23, 1
      %p132 = por %p130, %p131
      %p134 = scmp.ne.s32.totalorder %s119, %s133
      %p135 = scmp.eq.s32.totalorder %s23, 0
      %p136 = por %p134, %p135
      %s138 = sadd.s32 %s137, 1
      %p141 = scmp.eq.s32.totalorder %s17, 1
      %p142 = scmp.ne.s32.totalorder %s137, %s139
      %p143 = scmp.eq.s32.totalorder %s17, 0
      %p144 = por %p142, %p143
      %p145 = scmp.ne.s32.totalorder %s137, %s139
      %p146 = scmp.eq.s32.totalorder %s22, 1
      %p147 = por %p145, %p146
      %p148 = scmp.ne.s32.totalorder %s139, %s140
      %p149 = scmp.eq.s32.totalorder %s22, 0
      %p150 = por %p148, %p149
      %p151 = scmp.ne.s32.totalorder %s139, %s140
      %p152 = scmp.eq.s32.totalorder %s23, 1
      %p153 = por %p151, %p152
      %p155 = scmp.ne.s32.totalorder %s140, %s154
      %p156 = scmp.eq.s32.totalorder %s23, 0
      %p157 = por %p155, %p156
      %s158 = ssub.s32 %s24, %s36
      %s159 = ssub.s32 %s25, %s32
      %s160 = sor.u32 %s158, %s159
      %p161 = scmp.eq.s32.totalorder %s160, 0
      %s163 = sadd.s32 %s162, 1
      %s164 = scalar_select %p161, %s162, %s163
      %p167 = pneg %p161
      %p168 = scmp.eq.s32.totalorder %s17, 1
      %p169 = por %p167, %p168
      %p170 = scmp.ne.s32.totalorder %s162, %s165
      %p171 = scmp.eq.s32.totalorder %s17, 0
      %p172 = por %p170, %p171
      %p173 = scmp.ne.s32.totalorder %s162, %s165
      %p174 = scmp.eq.s32.totalorder %s22, 1
      %p175 = por %p173, %p174
      %p176 = scmp.ne.s32.totalorder %s165, %s166
      %p177 = scmp.eq.s32.totalorder %s22, 0
      %p178 = por %p176, %p177
      %p179 = scmp.ne.s32.totalorder %s165, %s166
      %p180 = scmp.eq.s32.totalorder %s23, 1
      %p181 = por %p179, %p180
      %p183 = scmp.ne.s32.totalorder %s166, %s182
      %p184 = scmp.eq.s32.totalorder %s23, 0
      %p185 = por %p183, %p184
      %p186 = scmp.le.s32.totalorder 1, %s17
      %p187 = scmp.lt.s32.totalorder %s17, 3
      %p188 = pnand %p186, %p187
      %p189 = pneg %p188
      // Predicated region
      $region9: #{tpu_custom_call.1} parent=5 // pred_check
        _
      $region10: #{tpu_custom_call.1} parent=5 // pred_check_branch
        %191 = sbr.rel (%p188) target = $region12
      $region11: #{tpu_custom_call.1} parent=5 // pred_region
        %s192 = ssub.s32 %s17, 1
        // Predicated region
        $region13: #{tpu_custom_call.1} parent=11 // pred_check
          %p193 = pneg %p108
        $region14: #{tpu_custom_call.1} parent=11 // pred_check_branch
          %195 = sbr.rel (%p193) target = $region16
        $region15: #{tpu_custom_call.1} parent=11 // pred_region
          _
        $region16: #{tpu_custom_call.1} parent=11 // pred_fallthru
          _
        // Predicated region
        $region17: #{tpu_custom_call.1} parent=11 // pred_check
          %p196 = pneg %p129
        $region18: #{tpu_custom_call.1} parent=11 // pred_check_branch
          %198 = sbr.rel (%p196) target = $region20
        $region19: #{tpu_custom_call.1} parent=11 // pred_region
          _
        $region20: #{tpu_custom_call.1} parent=11 // pred_fallthru
          _
        // Predicated region
        $region21: #{tpu_custom_call.1} parent=11 // pred_check
          %p199 = pneg %p150
        $region22: #{tpu_custom_call.1} parent=11 // pred_check_branch
          %201 = sbr.rel (%p199) target = $region24
        $region23: #{tpu_custom_call.1} parent=11 // pred_region
          _
        $region24: #{tpu_custom_call.1} parent=11 // pred_fallthru
          _
      $region12: #{tpu_custom_call.1} parent=5 // pred_fallthru
        _
      %p202 = scmp.lt.s32.totalorder %s17, 2
      // Predicated region
      $region25: #{tpu_custom_call.1} parent=5 // pred_check
        %p203 = pneg %p202
      $region26: #{tpu_custom_call.1} parent=5 // pred_check_branch
        %205 = sbr.rel (%p203) target = $region28
      $region27: #{tpu_custom_call.1} parent=5 // pred_region
        // Predicated region
        $region29: #{tpu_custom_call.1} parent=27 // pred_check
          %p206 = pneg %p51
        $region30: #{tpu_custom_call.1} parent=27 // pred_check_branch
          %208 = sbr.rel (%p206) target = $region32
        $region31: #{tpu_custom_call.1} parent=27 // pred_region
          %p209 = scmp.lt.s32.totalorder %s24, 1
          %s210 = scalar_select %p209, %s24, 1
          %p211 = scmp.lt.s32.totalorder %s25, 1
          %s212 = scalar_select %p211, %s25, 1
          %s213 = smul.addr %s210, 2
          %s214 = sadd.s32 %s212, %s213
          %s215 = smul.addr %s214, 8
          %s216 = scalar_lea.vmem %s0, %s215
        $region32: #{tpu_custom_call.1} parent=27 // pred_fallthru
          _
        // Predicated region
        $region33: #{tpu_custom_call.1} parent=27 // pred_check
          %p217 = pneg %p81
        $region34: #{tpu_custom_call.1} parent=27 // pred_check_branch
          %219 = sbr.rel (%p217) target = $region36
        $region35: #{tpu_custom_call.1} parent=27 // pred_region
          %s220 = sand.u32 %s71, 1
          %s221 = scalar_lea.sflag [#allocation3], %s220
          %s222 = sand.u32 %s71, 1
          %s223 = smul.addr %s222, 8
          %s224 = scalar_lea.vmem [#allocation2], %s223
          %s225 = sadd.s32 %s25, 1
          %s227 = ssub.s32 128, 128
          %228 = vsyncadd %s221, %s227
          %s229 = smul.addr %s24, 2
          %s230 = sadd.s32 %s225, %s229
          %s231 = smul.addr %s230, 128
          %s232 = scalar_lea.hbm %s1, %s231
          %s234 = sshll.u32 %s224, 4
          %s235 = int_to_ptr.vmem [resolvable:$true] %s234
          %237 = dma.hbm_to_vmem [thread:$0]  %s232, 128, %s235, %s221
        $region36: #{tpu_custom_call.1} parent=27 // pred_fallthru
          _
      $region28: #{tpu_custom_call.1} parent=5 // pred_fallthru
        _
      %p238 = scmp.le.s32.totalorder 1, %s17
      %p239 = scmp.lt.s32.totalorder %s17, 3
      %p240 = pnand %p238, %p239
      %p241 = pneg %p240
      // Predicated region
      $region37: #{tpu_custom_call.1} parent=5 // pred_check
        _
      $region38: #{tpu_custom_call.1} parent=5 // pred_check_branch
        %243 = sbr.rel (%p240) target = $region40
      $region39: #{tpu_custom_call.1} parent=5 // pred_region
        %s244 = ssub.s32 %s17, 1
        %s245 = sand.u32 %s74, 1
        %s246 = scalar_lea.sflag [#allocation3], %s245
        %s247 = sand.u32 %s74, 1
        %s248 = smul.addr %s247, 8
        %s249 = scalar_lea.vmem [#allocation2], %s248
        // Predicated region
        $region41: #{tpu_custom_call.1} parent=39 // pred_check
          %p250 = pneg %p87
        $region42: #{tpu_custom_call.1} parent=39 // pred_check_branch
          %252 = sbr.rel (%p250) target = $region44
        $region43: #{tpu_custom_call.1} parent=39 // pred_region
          %253 = dma.done %s246, 128
        $region44: #{tpu_custom_call.1} parent=39 // pred_fallthru
          _
        %p254 = scmp.lt.s32.totalorder %s26, 1
        %s255 = scalar_select %p254, %s26, 1
        %p256 = scmp.lt.s32.totalorder %s27, 1
        %s257 = scalar_select %p256, %s27, 1
        %s258 = smul.addr %s255, 2
        %s259 = sadd.s32 %s257, %s258
        %s260 = smul.addr %s259, 8
        %s261 = scalar_lea.vmem %s0, %s260
        %p262 = pneg %p57
        %p263 = pneg %p54
        %s264 = sand.u32 %s74, 1
        %s265 = scalar_lea.sflag [#allocation3], %s264
        %s266 = sand.u32 %s74, 1
        %s267 = smul.addr %s266, 8
        %s268 = scalar_lea.vmem [#allocation2], %s267
        %p269 = pneg %p87
        %p270 = pneg %p84
        %p271 = pneg %p108
        %p272 = pneg %p105
        %p273 = pneg %p129
        %p274 = pneg %p126
        %p275 = pneg %p150
        %p276 = pneg %p147
        %p277 = pneg %p178
        %p278 = pneg %p175
        %s279 = sand.u32 %s165, 1
        %s280 = scalar_lea.sflag [#allocation4], %s279
        %s281 = sand.u32 %s165, 1
        %s282 = smul.addr %s281, 8
        %s283 = scalar_lea.vmem [#allocation5], %s282
        %p284 = scmp.lt.s32.totalorder %s26, 1
        %s285 = scalar_select %p284, %s26, 1
        %p286 = scmp.lt.s32.totalorder %s27, 1
        %s287 = scalar_select %p286, %s27, 1
        %s288 = smul.addr %s285, 2
        %s289 = sadd.s32 %s287, %s288
        %s290 = smul.addr %s289, 8
        %s291 = scalar_lea.vmem %s0, %s290
        %s292 = sadd.s32 %s27, 1
        %v293 = vld [vmem:[%s291] sm:$0xff]
        %v294 = vld [vmem:[%s4] sm:$0xff]
        %v295 = vld [vmem:[%s3] sm:$0xff]
        %v296 = vld [vmem:[%s249] sm:$0xff]
        %v297 = vld [vmem:[%s2] sm:$0xff]
        %299 = vset.pattern.permute.xlu0 0
        %300 = vperm.xlu0 %299, %v297
        %v301 = vpop.permute.xlu0 %300
        %v303 = vmul.f32 %v293, %v301
        %s304 = scalar_lea.vmem %s2, 8
        %v305 = vld [vmem:[%s304] sm:$0xff]
        %307 = vset.pattern.permute.xlu0 0
        %308 = vperm.xlu0 %307, %v305
        %v309 = vpop.permute.xlu0 %308
        %v311 = vmul.f32 %v293, %v309
        %v312 = vmul.f32 %v296, %v309
        %315 = vrot.lane.b32.xlu0 %v311, 127
        %v316 = vpop.permute.xlu0 %315
        %317 = vrot.lane.b32.xlu0 %v312, 127
        %v318 = vpop.permute.xlu0 %317
        %vm319 = vcmask 1039360
        %v320 = vsel %vm319, %v316, %v318
        %v322 = vadd.f32 %v303, %v320
        %s323 = scalar_lea.vmem %s2, 16
        %v324 = vld [vmem:[%s323] sm:$0xff]
        %326 = vset.pattern.permute.xlu0 0
        %327 = vperm.xlu0 %326, %v324
        %v328 = vpop.permute.xlu0 %327
        %v330 = vmul.f32 %v293, %v328
        %v331 = vmul.f32 %v296, %v328
        %334 = vrot.lane.b32.xlu0 %v330, 126
        %v335 = vpop.permute.xlu0 %334
        %336 = vrot.lane.b32.xlu0 %v331, 126
        %v337 = vpop.permute.xlu0 %336
        %vm338 = vcmask 1031168
        %v339 = vsel %vm338, %v335, %v337
        %v341 = vadd.f32 %v322, %v339
        %343 = vset.pattern.permute.xlu0 0
        %344 = vperm.xlu0 %343, %v294
        %v345 = vpop.permute.xlu0 %344
        %vm347 = vcmask 64512
        %v349 = vsel %vm347, %v295, 0
        %351 = vmatprep.subr.mxu0 0.0
        %352 = vmatpush1.msra.mxu0 0.0
        %353 = vmatprep.subr.mxu0 0.0
        %354 = vmatpush1.msra.mxu0 0.0
        %355 = vmatprep.subr.mxu0 0.0
        %356 = vmatpush1.msra.mxu0 0.0
        %357 = vmatprep.subr.mxu0 0.0
        %358 = vmatpush1.msra.mxu0 0.0
        %359 = vmatprep.subr.mxu0 0.0
        %360 = vmatpush1.msra.mxu0 0.0
        %361 = vmatprep.subr.mxu0 0.0
        %362 = vmatpush1.msra.mxu0 0.0
        %363 = vmatprep.subr.mxu0 0.0
        %364 = vmatpush1.msra.mxu0 0.0
        %365 = vmatprep.subr.mxu0 0.0
        %366 = vmatpush1.msra.mxu0 0.0
        %367 = vmatprep.subr.mxu0 0.0
        %368 = vmatpush1.msra.mxu0 0.0
        %369 = vmatprep.subr.mxu0 0.0
        %370 = vmatpush1.msra.mxu0 0.0
        %371 = vmatprep.subr.mxu0 0.0
        %372 = vmatpush1.msra.mxu0 0.0
        %373 = vmatprep.subr.mxu0 0.0
        %374 = vmatpush1.msra.mxu0 0.0
        %375 = vmatprep.subr.mxu0 0.0
        %376 = vmatpush1.msra.mxu0 0.0
        %377 = vmatprep.subr.mxu0 0.0
        %378 = vmatpush1.msra.mxu0 0.0
        %379 = vmatprep.subr.mxu0 0.0
        %380 = vmatpush1.msra.mxu0 0.0
        %381 = vmatprep.subr.mxu0 0.0
        %382 = vmatpush1.msra.mxu0 %v341
        %383 = vmatprep.subr.mxu0 0.0
        %384 = vmatpush2.msra.mxu0 0.0
        %385 = vmatprep.subr.mxu0 0.0
        %386 = vmatpush2.msra.mxu0 0.0
        %387 = vmatprep.subr.mxu0 0.0
        %388 = vmatpush2.msra.mxu0 0.0
        %389 = vmatprep.subr.mxu0 0.0
        %390 = vmatpush2.msra.mxu0 0.0
        %391 = vmatprep.subr.mxu0 0.0
        %392 = vmatpush2.msra.mxu0 0.0
        %393 = vmatprep.subr.mxu0 0.0
        %394 = vmatpush2.msra.mxu0 0.0
        %395 = vmatprep.subr.mxu0 0.0
        %396 = vmatpush2.msra.mxu0 0.0
        %397 = vmatprep.subr.mxu0 0.0
        %398 = vmatpush2.msra.mxu0 0.0
        %399 = vmatprep.subr.mxu0 0.0
        %400 = vmatpush2.msra.mxu0 0.0
        %401 = vmatprep.subr.mxu0 0.0
        %402 = vmatpush2.msra.mxu0 0.0
        %403 = vmatprep.subr.mxu0 0.0
        %404 = vmatpush2.msra.mxu0 0.0
        %405 = vmatprep.subr.mxu0 0.0
        %406 = vmatpush2.msra.mxu0 0.0
        %407 = vmatprep.subr.mxu0 0.0
        %408 = vmatpush2.msra.mxu0 0.0
        %409 = vmatprep.subr.mxu0 0.0
        %410 = vmatpush2.msra.mxu0 0.0
        %411 = vmatprep.subr.mxu0 0.0
        %412 = vmatpush2.msra.mxu0 0.0
        %413 = vmatprep.subr.mxu0 0.0
        %414 = vmatpush2.msra.mxu0 0.0
        %415 = vmatprep.mubr.f32.mxu0 0.0
        %416 = vmatmul.mubr.f32.gmra.mxu0 %v349
        %v417 = vpop.f32.mrf.mxu0
        %v418 = vadd.f32 %v345, %v417
        %v419 = vpop.f32.mrf.mxu0
        %420 = vdwg.mxu0
        %421 = vst [vmem:[%s283] sm:$0xff] %v418
        %s422 = sand.u32 %s165, 1
        %s423 = scalar_lea.sflag [#allocation4], %s422
        %s424 = sand.u32 %s165, 1
        %s425 = smul.addr %s424, 8
        %s426 = scalar_lea.vmem [#allocation5], %s425
        // Predicated region
        $region45: #{tpu_custom_call.1} parent=39 // pred_check
          %p427 = pneg %p175
        $region46: #{tpu_custom_call.1} parent=39 // pred_check_branch
          %429 = sbr.rel (%p427) target = $region48
        $region47: #{tpu_custom_call.1} parent=39 // pred_region
          %s431 = ssub.s32 128, 128
          %432 = vsyncadd %s423, %s431
          %s433 = sadd.s32 %s27, %s26
          %s434 = smul.addr %s433, 128
          %s435 = scalar_lea.hbm %s5, %s434
          %s437 = sshll.u32 %s426, 4
          %s438 = int_to_ptr.vmem [resolvable:$true] %s437
          %440 = dma.vmem_to_hbm [thread:$0]  %s438, 128, %s435, %s423
        $region48: #{tpu_custom_call.1} parent=39 // pred_fallthru
          _
      $region40: #{tpu_custom_call.1} parent=5 // pred_fallthru
        _
      %p441 = scmp.le.s32.totalorder 2, %s17
      // Predicated region
      $region49: #{tpu_custom_call.1} parent=5 // pred_check
        %p442 = pneg %p441
      $region50: #{tpu_custom_call.1} parent=5 // pred_check_branch
        %444 = sbr.rel (%p442) target = $region52
      $region51: #{tpu_custom_call.1} parent=5 // pred_region
        %s445 = ssub.s32 %s17, 2
        // Predicated region
        $region53: #{tpu_custom_call.1} parent=51 // pred_check
          %p446 = pneg %p181
        $region54: #{tpu_custom_call.1} parent=51 // pred_check_branch
          %448 = sbr.rel (%p446) target = $region56
        $region55: #{tpu_custom_call.1} parent=51 // pred_region
          %s449 = sand.u32 %s166, 1
          %s450 = scalar_lea.sflag [#allocation4], %s449
          %s451 = sand.u32 %s166, 1
          %s452 = smul.addr %s451, 8
          %s453 = scalar_lea.vmem [#allocation5], %s452
          %454 = dma.done %s450, 128
        $region56: #{tpu_custom_call.1} parent=51 // pred_fallthru
          _
      $region52: #{tpu_custom_call.1} parent=5 // pred_fallthru
        _
    $region6: #{tpu_custom_call.1} parent=1 // loop_footer
      %s21 = sadd.s32 1, %s17
    $region7: #{tpu_custom_call.1} parent=1 // loop_footer_branch
      %16 = sbr.rel target = $region3
    $region8: #{tpu_custom_call.1} parent=1 // loop_exit
      _
    %455 = vsyncpa [#allocation3], 1
    %s456 = scalar_lea.sflag [#allocation3], 1
    %457 = vsyncpa %s456, 1
    %458 = vsyncpa [#allocation4], 1
    %s459 = scalar_lea.sflag [#allocation4], 1
    %460 = vsyncpa %s459, 1

</llo_original>
